<compile_context>
chip_gen: v7x
topology: tpu7x:2x2x1
jax: 0.10.0
libtpu: 0.0.40
codegen_flags: <defaults>
</compile_context>

<pallas_src>
import functools
import math

import jax
import jax.numpy as jnp
from jax.experimental import pallas as pl
from jax.experimental.pallas import tpu as pltpu

_HALF_LOG_2PI = 0.5 * math.log(2.0 * math.pi)


def _actor_kernel(state_ref, eps_ref, w1_ref, w2_ref, w3_ref, b123_ref,
                  wh_ref, bh_ref, out_ref, *, action_dim, max_action):
    A = action_dim
    x = state_ref[...]                                                  # (B, S)
    b = b123_ref[...]                                                   # (3, H)

    # Trunk: Linear + ReLU x 3 (bias rows broadcast over batch).
    h = jnp.dot(x, w1_ref[...], preferred_element_type=jnp.float32)
    h = jnp.maximum(h + b[0:1, :], 0.0)
    h = jnp.dot(h, w2_ref[...], preferred_element_type=jnp.float32)
    h = jnp.maximum(h + b[1:2, :], 0.0)
    h = jnp.dot(h, w3_ref[...], preferred_element_type=jnp.float32)
    h = jnp.maximum(h + b[2:3, :], 0.0)

    # Both heads in one matmul: columns [0:A] = mu, [A:2A] = log_sigma.
    heads = jnp.dot(h, wh_ref[...], preferred_element_type=jnp.float32)
    heads = heads + bh_ref[...]                                         # (B, 2A)

    mu = heads[:, :A]
    log_sigma = jnp.clip(heads[:, A:2 * A], -5.0, 2.0)
    std = jnp.exp(log_sigma)

    # Reparameterized sample: action = mu + std * eps  (eps == 0 => deterministic).
    eps = eps_ref[...]                                                  # (B, A)
    action = mu + std * eps
    tanh_a = jnp.tanh(action)

    # Normal(mu, std).log_prob(action) = -0.5*eps^2 - log_sigma - 0.5*log(2*pi)
    lp = jnp.sum(-0.5 * eps * eps - log_sigma - _HALF_LOG_2PI,
                 axis=-1, keepdims=True)                                # (B, 1)
    lp = lp - jnp.sum(jnp.log(1.0 - tanh_a * tanh_a + 1e-6),
                      axis=-1, keepdims=True)

    # Single lane-packed output tile.
    out_ref[:, 0:A] = tanh_a * max_action
    out_ref[:, A:2 * A] = mu
    out_ref[:, 2 * A:3 * A] = std
    out_ref[:, 3 * A:3 * A + 1] = lp


def actor_forward(state, eps, params, max_action=1.0):
    """Pallas forward reproducing Actor.forward(state, need_log_prob=True).

    Returns (tanh_action * max_action, log_prob, mu, std).
    `eps` is the standard-normal reparameterization noise; pass zeros for the
    deterministic branch (action = mu).
    """
    w1, w2, w3, b123, w_head, b_head = params
    B, _ = state.shape
    A = eps.shape[-1]
    P = 3 * A + 1

    vmem = pl.BlockSpec(memory_space=pltpu.MemorySpace.VMEM)
    packed = pl.pallas_call(
        functools.partial(_actor_kernel, action_dim=A, max_action=max_action),
        out_shape=jax.ShapeDtypeStruct((B, P), jnp.float32),
        in_specs=[vmem] * 8,
        out_specs=vmem,
    )(state, eps, w1, w2, w3, b123, w_head, b_head)

    tanh_action = packed[:, 0:A]
    mu = packed[:, A:2 * A]
    std = packed[:, 2 * A:3 * A]
    log_prob = packed[:, 3 * A]
    return tanh_action, log_prob, mu, std


def init_params(key, state_dim, action_dim, hidden_dim):
    """Deterministic init mirroring Actor.__init__ scales (params pre-packed)."""
    keys = jax.random.split(key, 7)

    def kaiming_uniform(k, fan_in, shape):
        # nn.Linear default: kaiming_uniform_(a=sqrt(5)) => bound = 1/sqrt(fan_in)
        bound = 1.0 / math.sqrt(fan_in)
        return jax.random.uniform(k, shape, jnp.float32, -bound, bound)

    w1 = kaiming_uniform(keys[0], state_dim, (state_dim, hidden_dim))
    w2 = kaiming_uniform(keys[1], hidden_dim, (hidden_dim, hidden_dim))
    w3 = kaiming_uniform(keys[2], hidden_dim, (hidden_dim, hidden_dim))
    # Trunk biases are overwritten to 0.1 in Actor.__init__; pack all three rows.
    b123 = jnp.full((3, hidden_dim), 0.1, jnp.float32)

    # mu / log_sigma heads: uniform(-0.001, 0.001) for weights and biases.
    w_mu = jax.random.uniform(keys[3], (hidden_dim, action_dim), jnp.float32, -0.001, 0.001)
    b_mu = jax.random.uniform(keys[4], (1, action_dim), jnp.float32, -0.001, 0.001)
    w_ls = jax.random.uniform(keys[5], (hidden_dim, action_dim), jnp.float32, -0.001, 0.001)
    b_ls = jax.random.uniform(keys[6], (1, action_dim), jnp.float32, -0.001, 0.001)
    w_head = jnp.concatenate([w_mu, w_ls], axis=1)   # (H, 2A)
    b_head = jnp.concatenate([b_mu, b_ls], axis=1)   # (1, 2A)
    return (w1, w2, w3, b123, w_head, b_head)


def reference_forward(state, eps, params, max_action=1.0):
    """Pure-JAX reference of the PyTorch Actor.forward, for correctness checks."""
    w1, w2, w3, b123, w_head, b_head = params
    h = jax.nn.relu(state @ w1 + b123[0])
    h = jax.nn.relu(h @ w2 + b123[1])
    h = jax.nn.relu(h @ w3 + b123[2])
    heads = h @ w_head + b_head
    A = eps.shape[-1]
    mu = heads[:, :A]
    log_sigma = jnp.clip(heads[:, A:], -5.0, 2.0)
    std = jnp.exp(log_sigma)
    action = mu + std * eps
    tanh_a = jnp.tanh(action)
    log_prob = jnp.sum(-0.5 * eps * eps - log_sigma - _HALF_LOG_2PI, axis=-1)
    log_prob = log_prob - jnp.sum(jnp.log(1.0 - tanh_a * tanh_a + 1e-6), axis=-1)
    return tanh_a * max_action, log_prob, mu, std


if __name__ == "__main__":
    # Small shapes consistent with the module's forward.
    batch = 8
    state_dim = 12
    action_dim = 4
    hidden_dim = 32
    max_action = 1.0

    key = jax.random.PRNGKey(0)
    k_state, k_eps, k_params = jax.random.split(key, 3)
    state = jax.random.normal(k_state, (batch, state_dim), jnp.float32)
    params = init_params(k_params, state_dim, action_dim, hidden_dim)

    # Deterministic branch (action = mu), as used by Actor.act() at eval time.
    eps_det = jnp.zeros((batch, action_dim), jnp.float32)
    det_out = actor_forward(state, eps_det, params, max_action)
    det_out = jax.block_until_ready(det_out)

    # Stochastic branch via reparameterized noise (action = mu + std * eps).
    # TODO(synk): torch's policy_dist.rsample() draws noise internally; here the
    # standard-normal eps is supplied from the host (semantically equivalent).
    eps_st = jax.random.normal(k_eps, (batch, action_dim), jnp.float32)
    st_out = actor_forward(state, eps_st, params, max_action)
    st_out = jax.block_until_ready(st_out)

    for eps, outs in ((eps_det, det_out), (eps_st, st_out)):
        ref = reference_forward(state, eps, params, max_action)
        for got, want in zip(outs, ref):
            assert got.shape == want.shape, (got.shape, want.shape)
            assert jnp.allclose(got, want, atol=1e-4, rtol=1e-4), "mismatch vs reference"

    tanh_action, log_prob, mu, std = det_out
    assert tanh_action.shape == (batch, action_dim)
    assert log_prob.shape == (batch,)
    assert mu.shape == (batch, action_dim)
    assert std.shape == (batch, action_dim)

    print("KERNEL_OK")
</pallas_src>

<mosaic_0001>
module attributes {stable_mosaic.version = 11 : i64} {
  func.func @_actor_kernel(%arg0: memref<8x12xf32, #tpu.memory_space<vmem>>, %arg1: memref<8x4xf32, #tpu.memory_space<vmem>>, %arg2: memref<12x32xf32, #tpu.memory_space<vmem>>, %arg3: memref<32x32xf32, #tpu.memory_space<vmem>>, %arg4: memref<32x32xf32, #tpu.memory_space<vmem>>, %arg5: memref<3x32xf32, #tpu.memory_space<vmem>>, %arg6: memref<32x8xf32, #tpu.memory_space<vmem>>, %arg7: memref<1x8xf32, #tpu.memory_space<vmem>>, %arg8: memref<8x13xf32, #tpu.memory_space<vmem>>) attributes {dimension_semantics = [], scalar_prefetch = 0 : i64, scratch_operands = 0 : i64, tpu.core_type = #tpu.core_type<tc>} {
    %c0 = arith.constant 0 : index
    %c0_0 = arith.constant 0 : index
    %0 = vector.load %arg0[%c0, %c0_0] : memref<8x12xf32, #tpu.memory_space<vmem>>, vector<8x12xf32>
    %c0_1 = arith.constant 0 : index
    %c0_2 = arith.constant 0 : index
    %1 = vector.load %arg5[%c0_1, %c0_2] : memref<3x32xf32, #tpu.memory_space<vmem>>, vector<3x32xf32>
    %c0_3 = arith.constant 0 : index
    %c0_4 = arith.constant 0 : index
    %2 = vector.load %arg2[%c0_3, %c0_4] : memref<12x32xf32, #tpu.memory_space<vmem>>, vector<12x32xf32>
    %cst = arith.constant dense<0.000000e+00> : vector<8x32xf32>
    %3 = tpu.matmul %0, %2, %cst {dimension_numbers = #tpu.dot_dimension_numbers<[1], [0], [0], [1], [0, 0, 1, 1], [], []>} : vector<8x12xf32>, vector<12x32xf32>, vector<8x32xf32> -> vector<8x32xf32>
    %4 = vector.extract_strided_slice %1 {offsets = [0, 0], sizes = [1, 32], strides = [1, 1]} : vector<3x32xf32> to vector<1x32xf32>
    %5 = vector.broadcast %4 : vector<1x32xf32> to vector<8x32xf32>
    %6 = arith.addf %3, %5 : vector<8x32xf32>
    %cst_5 = arith.constant 0.000000e+00 : f32
    %7 = vector.broadcast %cst_5 : f32 to vector<8x32xf32>
    %8 = arith.maximumf %6, %7 : vector<8x32xf32>
    %c0_6 = arith.constant 0 : index
    %c0_7 = arith.constant 0 : index
    %9 = vector.load %arg3[%c0_6, %c0_7] : memref<32x32xf32, #tpu.memory_space<vmem>>, vector<32x32xf32>
    %cst_8 = arith.constant dense<0.000000e+00> : vector<8x32xf32>
    %10 = tpu.matmul %8, %9, %cst_8 {dimension_numbers = #tpu.dot_dimension_numbers<[1], [0], [0], [1], [0, 0, 1, 1], [], []>} : vector<8x32xf32>, vector<32x32xf32>, vector<8x32xf32> -> vector<8x32xf32>
    %11 = vector.extract_strided_slice %1 {offsets = [1, 0], sizes = [1, 32], strides = [1, 1]} : vector<3x32xf32> to vector<1x32xf32>
    %12 = vector.broadcast %11 : vector<1x32xf32> to vector<8x32xf32>
    %13 = arith.addf %10, %12 : vector<8x32xf32>
    %cst_9 = arith.constant 0.000000e+00 : f32
    %14 = vector.broadcast %cst_9 : f32 to vector<8x32xf32>
    %15 = arith.maximumf %13, %14 : vector<8x32xf32>
    %c0_10 = arith.constant 0 : index
    %c0_11 = arith.constant 0 : index
    %16 = vector.load %arg4[%c0_10, %c0_11] : memref<32x32xf32, #tpu.memory_space<vmem>>, vector<32x32xf32>
    %cst_12 = arith.constant dense<0.000000e+00> : vector<8x32xf32>
    %17 = tpu.matmul %15, %16, %cst_12 {dimension_numbers = #tpu.dot_dimension_numbers<[1], [0], [0], [1], [0, 0, 1, 1], [], []>} : vector<8x32xf32>, vector<32x32xf32>, vector<8x32xf32> -> vector<8x32xf32>
    %18 = vector.extract_strided_slice %1 {offsets = [2, 0], sizes = [1, 32], strides = [1, 1]} : vector<3x32xf32> to vector<1x32xf32>
    %19 = vector.broadcast %18 : vector<1x32xf32> to vector<8x32xf32>
    %20 = arith.addf %17, %19 : vector<8x32xf32>
    %cst_13 = arith.constant 0.000000e+00 : f32
    %21 = vector.broadcast %cst_13 : f32 to vector<8x32xf32>
    %22 = arith.maximumf %20, %21 : vector<8x32xf32>
    %c0_14 = arith.constant 0 : index
    %c0_15 = arith.constant 0 : index
    %23 = vector.load %arg6[%c0_14, %c0_15] : memref<32x8xf32, #tpu.memory_space<vmem>>, vector<32x8xf32>
    %cst_16 = arith.constant dense<0.000000e+00> : vector<8x8xf32>
    %24 = tpu.matmul %22, %23, %cst_16 {dimension_numbers = #tpu.dot_dimension_numbers<[1], [0], [0], [1], [0, 0, 1, 1], [], []>} : vector<8x32xf32>, vector<32x8xf32>, vector<8x8xf32> -> vector<8x8xf32>
    %c0_17 = arith.constant 0 : index
    %c0_18 = arith.constant 0 : index
    %25 = vector.load %arg7[%c0_17, %c0_18] : memref<1x8xf32, #tpu.memory_space<vmem>>, vector<1x8xf32>
    %26 = vector.broadcast %25 : vector<1x8xf32> to vector<8x8xf32>
    %27 = arith.addf %24, %26 : vector<8x8xf32>
    %28 = vector.extract_strided_slice %27 {offsets = [0, 0], sizes = [8, 4], strides = [1, 1]} : vector<8x8xf32> to vector<8x4xf32>
    %29 = vector.extract_strided_slice %27 {offsets = [0, 4], sizes = [8, 4], strides = [1, 1]} : vector<8x8xf32> to vector<8x4xf32>
    %cst_19 = arith.constant -5.000000e+00 : f32
    %cst_20 = arith.constant 2.000000e+00 : f32
    %30 = vector.broadcast %cst_19 : f32 to vector<8x4xf32>
    %31 = arith.maximumf %30, %29 : vector<8x4xf32>
    %32 = vector.broadcast %cst_20 : f32 to vector<8x4xf32>
    %33 = arith.minimumf %32, %31 : vector<8x4xf32>
    %34 = math.exp %33 : vector<8x4xf32>
    %c0_21 = arith.constant 0 : index
    %c0_22 = arith.constant 0 : index
    %35 = vector.load %arg1[%c0_21, %c0_22] : memref<8x4xf32, #tpu.memory_space<vmem>>, vector<8x4xf32>
    %36 = arith.mulf %34, %35 : vector<8x4xf32>
    %37 = arith.addf %28, %36 : vector<8x4xf32>
    %38 = math.tanh %37 : vector<8x4xf32>
    %cst_23 = arith.constant -5.000000e-01 : f32
    %39 = vector.broadcast %cst_23 : f32 to vector<8x4xf32>
    %40 = arith.mulf %39, %35 : vector<8x4xf32>
    %41 = arith.mulf %40, %35 : vector<8x4xf32>
    %42 = arith.subf %41, %33 : vector<8x4xf32>
    %cst_24 = arith.constant 0.918938517 : f32
    %43 = vector.broadcast %cst_24 : f32 to vector<8x4xf32>
    %44 = arith.subf %42, %43 : vector<8x4xf32>
    %cst_25 = arith.constant dense<0.000000e+00> : vector<8xf32>
    %45 = vector.multi_reduction <add>, %44, %cst_25 [1] : vector<8x4xf32> to vector<8xf32>
    %46 = vector.shape_cast %45 : vector<8xf32> to vector<8x1xf32>
    %47 = arith.mulf %38, %38 : vector<8x4xf32>
    %cst_26 = arith.constant 1.000000e+00 : f32
    %48 = vector.broadcast %cst_26 : f32 to vector<8x4xf32>
    %49 = arith.subf %48, %47 : vector<8x4xf32>
    %cst_27 = arith.constant 9.99999997E-7 : f32
    %50 = vector.broadcast %cst_27 : f32 to vector<8x4xf32>
    %51 = arith.addf %49, %50 : vector<8x4xf32>
    %52 = math.log %51 : vector<8x4xf32>
    %cst_28 = arith.constant dense<0.000000e+00> : vector<8xf32>
    %53 = vector.multi_reduction <add>, %52, %cst_28 [1] : vector<8x4xf32> to vector<8xf32>
    %54 = vector.shape_cast %53 : vector<8xf32> to vector<8x1xf32>
    %55 = arith.subf %46, %54 : vector<8x1xf32>
    %cst_29 = arith.constant 1.000000e+00 : f32
    %56 = vector.broadcast %cst_29 : f32 to vector<8x4xf32>
    %57 = arith.mulf %38, %56 : vector<8x4xf32>
    %c0_30 = arith.constant 0 : index
    %c0_31 = arith.constant 0 : index
    %58 = vector.load %arg8[%c0_30, %c0_31] : memref<8x13xf32, #tpu.memory_space<vmem>>, vector<8x4xf32>
    tpu.vector_store %arg8[%c0_30, %c0_31], %57 {strides = array<i32>} : memref<8x13xf32, #tpu.memory_space<vmem>>, vector<8x4xf32>,
    %c0_32 = arith.constant 0 : index
    %c4 = arith.constant 4 : index
    %59 = vector.load %arg8[%c0_32, %c4] : memref<8x13xf32, #tpu.memory_space<vmem>>, vector<8x4xf32>
    tpu.vector_store %arg8[%c0_32, %c4], %28 {strides = array<i32>} : memref<8x13xf32, #tpu.memory_space<vmem>>, vector<8x4xf32>,
    %c0_33 = arith.constant 0 : index
    %c8 = arith.constant 8 : index
    %60 = vector.load %arg8[%c0_33, %c8] : memref<8x13xf32, #tpu.memory_space<vmem>>, vector<8x4xf32>
    tpu.vector_store %arg8[%c0_33, %c8], %34 {strides = array<i32>} : memref<8x13xf32, #tpu.memory_space<vmem>>, vector<8x4xf32>,
    %c0_34 = arith.constant 0 : index
    %c12 = arith.constant 12 : index
    %61 = vector.load %arg8[%c0_34, %c12] : memref<8x13xf32, #tpu.memory_space<vmem>>, vector<8x1xf32>
    tpu.vector_store %arg8[%c0_34, %c12], %55 {strides = array<i32>} : memref<8x13xf32, #tpu.memory_space<vmem>>, vector<8x1xf32>,
    return
  }
}

</mosaic_0001>

<llo_original>
// kernel: tpu_custom_call.1
$region0: #{tpu_custom_call.1}
  #allocation0 [shape = 'u32[]', space=smem, size = 0x4, offset = 0x4, fixed_abs, tag = 'smem constant byte address 0x4 - core index']
  #allocation1 [shape = 'u32[144,128]{1,0:T(1,128)}', space=vmem, size = 0x12000, scoped, tag = 'internal scratch']
  %s0 = inlined_call_operand.hbm [shape: f32[8,12], index: 0, kind: input, shape index: {}]
  %s1 = inlined_call_operand.vmem [shape: f32[8,4], index: 1, kind: input, shape index: {}]
  %s2 = inlined_call_operand.hbm [shape: f32[12,32], index: 2, kind: input, shape index: {}]
  %s3 = inlined_call_operand.vmem [shape: f32[32,32], index: 3, kind: input, shape index: {}]
  %s4 = inlined_call_operand.vmem [shape: f32[32,32], index: 4, kind: input, shape index: {}]
  %s5 = inlined_call_operand.hbm [shape: f32[3,32], index: 5, kind: input, shape index: {}]
  %s6 = inlined_call_operand.vmem [shape: f32[32,8], index: 6, kind: input, shape index: {}]
  %s7 = inlined_call_operand.vmem [shape: f32[1,8], index: 7, kind: input, shape index: {}]
  %s8 = inlined_call_operand.hbm [shape: f32[8,13], index: 8, kind: output, shape index: {}]
  %s9 = sld [smem:[#allocation0]]
  $region54: #{tpu_custom_call.1} parent=0
    _
  %s11 = ssub.s32 1, %s9
  %s12 = scalar_select 0, %s11, %s9
  $region1: #{tpu_custom_call.1} parent=0
    #allocation2 [shape = 'u8[4096]{0}', space=vmem, size = 0x1000, scoped, tag = 'input window, operand 0, single buffered']
    #allocation3 [shape = 's32[1]{0}', space=sflag, size = 0x4, scoped, tag = 'scoped memory for tpu_custom_call.1']
    #allocation4 [shape = 's32[1]{0}', space=sflag, size = 0x4, scoped, tag = 'scoped memory for tpu_custom_call.1']
    #allocation5 [shape = 'u8[8192]{0}', space=vmem, size = 0x2000, scoped, tag = 'input window, operand 2, single buffered']
    #allocation6 [shape = 's32[1]{0}', space=sflag, size = 0x4, scoped, tag = 'scoped memory for tpu_custom_call.1']
    #allocation7 [shape = 'u8[2048]{0}', space=vmem, size = 0x800, scoped, tag = 'input window, operand 5, single buffered']
    #allocation8 [shape = 'u8[4096]{0}', space=vmem, size = 0x1000, scoped, tag = 'output window, operand 0, single buffered']
    %13 = vsyncpa [#allocation3], 0
    %14 = vsyncpa [#allocation6], 0
    %15 = vsyncpa [#allocation4], 0
    // Predicated region
    $region2: #{tpu_custom_call.1} parent=1 // pred_check
      _
    $region3: #{tpu_custom_call.1} parent=1 // pred_check_branch
      %17 = sbr.rel (0) target = $region5
    $region4: #{tpu_custom_call.1} parent=1 // pred_region
      %s19 = ssub.s32 128, 128
      %20 = vsyncadd [#allocation3], %s19
      %s22 = sshll.u32 [#allocation2], 4
      %s23 = int_to_ptr.vmem [resolvable:$true] %s22
      %25 = dma.hbm_to_vmem [thread:$0]  %s0, 128, %s23, [#allocation3]
    $region5: #{tpu_custom_call.1} parent=1 // pred_fallthru
      _
    // Predicated region
    $region6: #{tpu_custom_call.1} parent=1 // pred_check
      _
    $region7: #{tpu_custom_call.1} parent=1 // pred_check_branch
      %27 = sbr.rel (0) target = $region9
    $region8: #{tpu_custom_call.1} parent=1 // pred_region
      _
    $region9: #{tpu_custom_call.1} parent=1 // pred_fallthru
      _
    // Predicated region
    $region10: #{tpu_custom_call.1} parent=1 // pred_check
      _
    $region11: #{tpu_custom_call.1} parent=1 // pred_check_branch
      %29 = sbr.rel (0) target = $region13
    $region12: #{tpu_custom_call.1} parent=1 // pred_region
      %s31 = ssub.s32 256, 256
      %32 = vsyncadd [#allocation6], %s31
      %s33 = sshll.u32 [#allocation5], 4
      %s34 = int_to_ptr.vmem [resolvable:$true] %s33
      %39 = dma.hbm_to_vmem [thread:$0]  %s2, 256, %s34, [#allocation6], 128, 128, 8
    $region13: #{tpu_custom_call.1} parent=1 // pred_fallthru
      _
    // Predicated region
    $region14: #{tpu_custom_call.1} parent=1 // pred_check
      _
    $region15: #{tpu_custom_call.1} parent=1 // pred_check_branch
      %41 = sbr.rel (0) target = $region17
    $region16: #{tpu_custom_call.1} parent=1 // pred_region
      _
    $region17: #{tpu_custom_call.1} parent=1 // pred_fallthru
      _
    // Predicated region
    $region18: #{tpu_custom_call.1} parent=1 // pred_check
      _
    $region19: #{tpu_custom_call.1} parent=1 // pred_check_branch
      %43 = sbr.rel (0) target = $region21
    $region20: #{tpu_custom_call.1} parent=1 // pred_region
      _
    $region21: #{tpu_custom_call.1} parent=1 // pred_fallthru
      _
    // Predicated region
    $region22: #{tpu_custom_call.1} parent=1 // pred_check
      _
    $region23: #{tpu_custom_call.1} parent=1 // pred_check_branch
      %45 = sbr.rel (0) target = $region25
    $region24: #{tpu_custom_call.1} parent=1 // pred_region
      %s47 = ssub.s32 64, 64
      %48 = vsyncadd [#allocation6], %s47
      %s50 = sshll.u32 [#allocation7], 4
      %s51 = int_to_ptr.vmem [resolvable:$true] %s50
      %53 = dma.hbm_to_vmem [thread:$0]  %s5, 64, %s51, [#allocation6]
    $region25: #{tpu_custom_call.1} parent=1 // pred_fallthru
      _
    // Predicated region
    $region26: #{tpu_custom_call.1} parent=1 // pred_check
      _
    $region27: #{tpu_custom_call.1} parent=1 // pred_check_branch
      %55 = sbr.rel (0) target = $region29
    $region28: #{tpu_custom_call.1} parent=1 // pred_region
      _
    $region29: #{tpu_custom_call.1} parent=1 // pred_fallthru
      _
    // Predicated region
    $region30: #{tpu_custom_call.1} parent=1 // pred_check
      _
    $region31: #{tpu_custom_call.1} parent=1 // pred_check_branch
      %57 = sbr.rel (0) target = $region33
    $region32: #{tpu_custom_call.1} parent=1 // pred_region
      _
    $region33: #{tpu_custom_call.1} parent=1 // pred_fallthru
      _
    // Predicated region
    $region34: #{tpu_custom_call.1} parent=1 // pred_check
      _
    $region35: #{tpu_custom_call.1} parent=1 // pred_check_branch
      %59 = sbr.rel (0) target = $region37
    $region36: #{tpu_custom_call.1} parent=1 // pred_region
      %60 = dma.done [#allocation3], 128
    $region37: #{tpu_custom_call.1} parent=1 // pred_fallthru
      _
    // Predicated region
    $region38: #{tpu_custom_call.1} parent=1 // pred_check
      _
    $region39: #{tpu_custom_call.1} parent=1 // pred_check_branch
      %62 = sbr.rel (0) target = $region41
    $region40: #{tpu_custom_call.1} parent=1 // pred_region
      %63 = dma.done [#allocation6], 256
    $region41: #{tpu_custom_call.1} parent=1 // pred_fallthru
      _
    // Predicated region
    $region42: #{tpu_custom_call.1} parent=1 // pred_check
      _
    $region43: #{tpu_custom_call.1} parent=1 // pred_check_branch
      %65 = sbr.rel (0) target = $region45
    $region44: #{tpu_custom_call.1} parent=1 // pred_region
      %66 = dma.done [#allocation6], 64
    $region45: #{tpu_custom_call.1} parent=1 // pred_fallthru
      _
    %v67 = vld [vmem:[#allocation2] sm:$0xff]
    %v68 = vld [vmem:[#allocation7] sm:$0x7]
    %v69 = vld [vmem:[#allocation5] sm:$0xff]
    %v70 = vld [vmem:[#allocation5 + $0x8] sm:$0xf]
    %v71 = vlaneseq
    %v72 = vshrl.u32 %v71, 7
    %v73 = vsub.s32 0, %v72
    %v74 = vrot.slane %v68, %v73
    %vm75 = vcmask 97280
    %v77 = vsel %vm75, %v67, 0
    %vm79 = vcmask 1043456
    %v81 = vsel %vm79, %v70, 0
    %83 = vmatprep.subr.mxu0 0.0
    %84 = vmatpush1.msra.mxu0 %v69
    %85 = vmatprep.subr.mxu0 0.0
    %86 = vmatpush1.msra.mxu0 %v81
    %87 = vmatprep.subr.mxu0 0.0
    %88 = vmatpush1.msra.mxu0 0.0
    %89 = vmatprep.subr.mxu0 0.0
    %90 = vmatpush1.msra.mxu0 0.0
    %91 = vmatprep.subr.mxu0 0.0
    %92 = vmatpush1.msra.mxu0 0.0
    %93 = vmatprep.subr.mxu0 0.0
    %94 = vmatpush1.msra.mxu0 0.0
    %95 = vmatprep.subr.mxu0 0.0
    %96 = vmatpush1.msra.mxu0 0.0
    %97 = vmatprep.subr.mxu0 0.0
    %98 = vmatpush1.msra.mxu0 0.0
    %99 = vmatprep.subr.mxu0 0.0
    %100 = vmatpush1.msra.mxu0 0.0
    %101 = vmatprep.subr.mxu0 0.0
    %102 = vmatpush1.msra.mxu0 0.0
    %103 = vmatprep.subr.mxu0 0.0
    %104 = vmatpush1.msra.mxu0 0.0
    %105 = vmatprep.subr.mxu0 0.0
    %106 = vmatpush1.msra.mxu0 0.0
    %107 = vmatprep.subr.mxu0 0.0
    %108 = vmatpush1.msra.mxu0 0.0
    %109 = vmatprep.subr.mxu0 0.0
    %110 = vmatpush1.msra.mxu0 0.0
    %111 = vmatprep.subr.mxu0 0.0
    %112 = vmatpush1.msra.mxu0 0.0
    %113 = vmatprep.subr.mxu0 0.0
    %114 = vmatpush1.msra.mxu0 0.0
    %115 = vmatprep.subr.mxu0 0.0
    %116 = vmatpush1.msra.mxu0 0.0
    %117 = vmatprep.subr.mxu0 0.0
    %118 = vmatpush1.msra.mxu0 0.0
    %119 = vmatprep.subr.mxu0 0.0
    %120 = vmatpush1.msra.mxu0 0.0
    %121 = vmatprep.subr.mxu0 0.0
    %122 = vmatpush1.msra.mxu0 0.0
    %123 = vmatprep.subr.mxu0 0.0
    %124 = vmatpush1.msra.mxu0 0.0
    %125 = vmatprep.subr.mxu0 0.0
    %126 = vmatpush1.msra.mxu0 0.0
    %127 = vmatprep.subr.mxu0 0.0
    %128 = vmatpush1.msra.mxu0 0.0
    %129 = vmatprep.subr.mxu0 0.0
    %130 = vmatpush1.msra.mxu0 0.0
    %131 = vmatprep.subr.mxu0 0.0
    %132 = vmatpush1.msra.mxu0 0.0
    %133 = vmatprep.subr.mxu0 0.0
    %134 = vmatpush1.msra.mxu0 0.0
    %135 = vmatprep.subr.mxu0 0.0
    %136 = vmatpush1.msra.mxu0 0.0
    %137 = vmatprep.subr.mxu0 0.0
    %138 = vmatpush1.msra.mxu0 0.0
    %139 = vmatprep.subr.mxu0 0.0
    %140 = vmatpush1.msra.mxu0 0.0
    %141 = vmatprep.subr.mxu0 0.0
    %142 = vmatpush1.msra.mxu0 0.0
    %143 = vmatprep.subr.mxu0 0.0
    %144 = vmatpush1.msra.mxu0 0.0
    %145 = vmatprep.subr.mxu0 0.0
    %146 = vmatpush1.msra.mxu0 0.0
    %147 = vmatprep.mubr.f32.mxu0 0.0
    %148 = vmatmul.mubr.f32.gmra.mrb[0].mxu0 %v77
    %v149 = vpop.f32.mrb[0].mxu0
    %v150 = vadd.f32 %v74, %v149
    %v151 = vpop.f32.mrb[0].mxu0
    %152 = vdwg.mxu0
    %v153 = vmax.f32 %v150, 0.0
    %v154 = vld [vmem:[%s3] sm:$0xff]
    %v155 = vld [vmem:[%s3 + $0x8] sm:$0xff]
    %v156 = vld [vmem:[%s3 + $0x10] sm:$0xff]
    %v157 = vld [vmem:[%s3 + $0x18] sm:$0xff]
    %v158 = vlaneseq
    %v159 = vshrl.u32 %v158, 7
    %v160 = vsub.s32 1, %v159
    %v161 = vrot.slane %v68, %v160
    %vm162 = vcmask 261120
    %v164 = vsel %vm162, %v153, 0
    %166 = vmatprep.subr.mxu0 0.0
    %167 = vmatpush1.msra.mxu0 %v154
    %168 = vmatprep.subr.mxu0 0.0
    %169 = vmatpush1.msra.mxu0 %v155
    %170 = vmatprep.subr.mxu0 0.0
    %171 = vmatpush1.msra.mxu0 %v156
    %172 = vmatprep.subr.mxu0 0.0
    %173 = vmatpush1.msra.mxu0 %v157
    %174 = vmatprep.subr.mxu0 0.0
    %175 = vmatpush1.msra.mxu0 0.0
    %176 = vmatprep.subr.mxu0 0.0
    %177 = vmatpush1.msra.mxu0 0.0
    %178 = vmatprep.subr.mxu0 0.0
    %179 = vmatpush1.msra.mxu0 0.0
    %180 = vmatprep.subr.mxu0 0.0
    %181 = vmatpush1.msra.mxu0 0.0
    %182 = vmatprep.subr.mxu0 0.0
    %183 = vmatpush1.msra.mxu0 0.0
    %184 = vmatprep.subr.mxu0 0.0
    %185 = vmatpush1.msra.mxu0 0.0
    %186 = vmatprep.subr.mxu0 0.0
    %187 = vmatpush1.msra.mxu0 0.0
    %188 = vmatprep.subr.mxu0 0.0
    %189 = vmatpush1.msra.mxu0 0.0
    %190 = vmatprep.subr.mxu0 0.0
    %191 = vmatpush1.msra.mxu0 0.0
    %192 = vmatprep.subr.mxu0 0.0
    %193 = vmatpush1.msra.mxu0 0.0
    %194 = vmatprep.subr.mxu0 0.0
    %195 = vmatpush1.msra.mxu0 0.0
    %196 = vmatprep.subr.mxu0 0.0
    %197 = vmatpush1.msra.mxu0 0.0
    %198 = vmatprep.subr.mxu0 0.0
    %199 = vmatpush1.msra.mxu0 0.0
    %200 = vmatprep.subr.mxu0 0.0
    %201 = vmatpush1.msra.mxu0 0.0
    %202 = vmatprep.subr.mxu0 0.0
    %203 = vmatpush1.msra.mxu0 0.0
    %204 = vmatprep.subr.mxu0 0.0
    %205 = vmatpush1.msra.mxu0 0.0
    %206 = vmatprep.subr.mxu0 0.0
    %207 = vmatpush1.msra.mxu0 0.0
    %208 = vmatprep.subr.mxu0 0.0
    %209 = vmatpush1.msra.mxu0 0.0
    %210 = vmatprep.subr.mxu0 0.0
    %211 = vmatpush1.msra.mxu0 0.0
    %212 = vmatprep.subr.mxu0 0.0
    %213 = vmatpush1.msra.mxu0 0.0
    %214 = vmatprep.subr.mxu0 0.0
    %215 = vmatpush1.msra.mxu0 0.0
    %216 = vmatprep.subr.mxu0 0.0
    %217 = vmatpush1.msra.mxu0 0.0
    %218 = vmatprep.subr.mxu0 0.0
    %219 = vmatpush1.msra.mxu0 0.0
    %220 = vmatprep.subr.mxu0 0.0
    %221 = vmatpush1.msra.mxu0 0.0
    %222 = vmatprep.subr.mxu0 0.0
    %223 = vmatpush1.msra.mxu0 0.0
    %224 = vmatprep.subr.mxu0 0.0
    %225 = vmatpush1.msra.mxu0 0.0
    %226 = vmatprep.subr.mxu0 0.0
    %227 = vmatpush1.msra.mxu0 0.0
    %228 = vmatprep.subr.mxu0 0.0
    %229 = vmatpush1.msra.mxu0 0.0
    %230 = vmatprep.mubr.f32.mxu0 0.0
    %231 = vmatmul.mubr.f32.gmra.mrb[0].mxu0 %v164
    %v232 = vpop.f32.mrb[0].mxu0
    %v233 = vadd.f32 %v161, %v232
    %v234 = vpop.f32.mrb[0].mxu0
    %235 = vdwg.mxu0
    %v236 = vmax.f32 %v233, 0.0
    %v237 = vld [vmem:[%s4] sm:$0xff]
    %v238 = vld [vmem:[%s4 + $0x8] sm:$0xff]
    %v239 = vld [vmem:[%s4 + $0x10] sm:$0xff]
    %v240 = vld [vmem:[%s4 + $0x18] sm:$0xff]
    %v241 = vlaneseq
    %v242 = vshrl.u32 %v241, 7
    %v243 = vsub.s32 2, %v242
    %v244 = vrot.slane %v68, %v243
    %v246 = vsel %vm162, %v236, 0
    %248 = vmatprep.subr.mxu0 0.0
    %249 = vmatpush1.msra.mxu0 %v237
    %250 = vmatprep.subr.mxu0 0.0
    %251 = vmatpush1.msra.mxu0 %v238
    %252 = vmatprep.subr.mxu0 0.0
    %253 = vmatpush1.msra.mxu0 %v239
    %254 = vmatprep.subr.mxu0 0.0
    %255 = vmatpush1.msra.mxu0 %v240
    %256 = vmatprep.subr.mxu0 0.0
    %257 = vmatpush1.msra.mxu0 0.0
    %258 = vmatprep.subr.mxu0 0.0
    %259 = vmatpush1.msra.mxu0 0.0
    %260 = vmatprep.subr.mxu0 0.0
    %261 = vmatpush1.msra.mxu0 0.0
    %262 = vmatprep.subr.mxu0 0.0
    %263 = vmatpush1.msra.mxu0 0.0
    %264 = vmatprep.subr.mxu0 0.0
    %265 = vmatpush1.msra.mxu0 0.0
    %266 = vmatprep.subr.mxu0 0.0
    %267 = vmatpush1.msra.mxu0 0.0
    %268 = vmatprep.subr.mxu0 0.0
    %269 = vmatpush1.msra.mxu0 0.0
    %270 = vmatprep.subr.mxu0 0.0
    %271 = vmatpush1.msra.mxu0 0.0
    %272 = vmatprep.subr.mxu0 0.0
    %273 = vmatpush1.msra.mxu0 0.0
    %274 = vmatprep.subr.mxu0 0.0
    %275 = vmatpush1.msra.mxu0 0.0
    %276 = vmatprep.subr.mxu0 0.0
    %277 = vmatpush1.msra.mxu0 0.0
    %278 = vmatprep.subr.mxu0 0.0
    %279 = vmatpush1.msra.mxu0 0.0
    %280 = vmatprep.subr.mxu0 0.0
    %281 = vmatpush1.msra.mxu0 0.0
    %282 = vmatprep.subr.mxu0 0.0
    %283 = vmatpush1.msra.mxu0 0.0
    %284 = vmatprep.subr.mxu0 0.0
    %285 = vmatpush1.msra.mxu0 0.0
    %286 = vmatprep.subr.mxu0 0.0
    %287 = vmatpush1.msra.mxu0 0.0
    %288 = vmatprep.subr.mxu0 0.0
    %289 = vmatpush1.msra.mxu0 0.0
    %290 = vmatprep.subr.mxu0 0.0
    %291 = vmatpush1.msra.mxu0 0.0
    %292 = vmatprep.subr.mxu0 0.0
    %293 = vmatpush1.msra.mxu0 0.0
    %294 = vmatprep.subr.mxu0 0.0
    %295 = vmatpush1.msra.mxu0 0.0
    %296 = vmatprep.subr.mxu0 0.0
    %297 = vmatpush1.msra.mxu0 0.0
    %298 = vmatprep.subr.mxu0 0.0
    %299 = vmatpush1.msra.mxu0 0.0
    %300 = vmatprep.subr.mxu0 0.0
    %301 = vmatpush1.msra.mxu0 0.0
    %302 = vmatprep.subr.mxu0 0.0
    %303 = vmatpush1.msra.mxu0 0.0
    %304 = vmatprep.subr.mxu0 0.0
    %305 = vmatpush1.msra.mxu0 0.0
    %306 = vmatprep.subr.mxu0 0.0
    %307 = vmatpush1.msra.mxu0 0.0
    %308 = vmatprep.subr.mxu0 0.0
    %309 = vmatpush1.msra.mxu0 0.0
    %310 = vmatprep.subr.mxu0 0.0
    %311 = vmatpush1.msra.mxu0 0.0
    %312 = vmatprep.mubr.f32.mxu0 0.0
    %313 = vmatmul.mubr.f32.gmra.mrb[0].mxu0 %v246
    %v314 = vpop.f32.mrb[0].mxu0
    %v315 = vadd.f32 %v244, %v314
    %v316 = vpop.f32.mrb[0].mxu0
    %317 = vdwg.mxu0
    %v318 = vmax.f32 %v315, 0.0
    %v319 = vld [vmem:[%s6] sm:$0xff]
    %v320 = vld [vmem:[%s6 + $0x8] sm:$0xff]
    %v321 = vld [vmem:[%s6 + $0x10] sm:$0xff]
    %v322 = vld [vmem:[%s6 + $0x18] sm:$0xff]
    %v323 = vld [vmem:[%s7] sm:$0x1]
    %v325 = vlaneseq
    %v326 = vshrl.u32 %v325, 7
    %v327 = vsub.s32 0, %v326
    %v328 = vrot.slane %v323, %v327
    %v331 = vsel %vm162, %v318, 0
    %333 = vmatprep.subr.mxu0 0.0
    %334 = vmatpush1.msra.mxu0 %v319
    %335 = vmatprep.subr.mxu0 0.0
    %336 = vmatpush1.msra.mxu0 %v320
    %337 = vmatprep.subr.mxu0 0.0
    %338 = vmatpush1.msra.mxu0 %v321
    %339 = vmatprep.subr.mxu0 0.0
    %340 = vmatpush1.msra.mxu0 %v322
    %341 = vmatprep.subr.mxu0 0.0
    %342 = vmatpush1.msra.mxu0 0.0
    %343 = vmatprep.subr.mxu0 0.0
    %344 = vmatpush1.msra.mxu0 0.0
    %345 = vmatprep.subr.mxu0 0.0
    %346 = vmatpush1.msra.mxu0 0.0
    %347 = vmatprep.subr.mxu0 0.0
    %348 = vmatpush1.msra.mxu0 0.0
    %349 = vmatprep.subr.mxu0 0.0
    %350 = vmatpush1.msra.mxu0 0.0
    %351 = vmatprep.subr.mxu0 0.0
    %352 = vmatpush1.msra.mxu0 0.0
    %353 = vmatprep.subr.mxu0 0.0
    %354 = vmatpush1.msra.mxu0 0.0
    %355 = vmatprep.subr.mxu0 0.0
    %356 = vmatpush1.msra.mxu0 0.0
    %357 = vmatprep.subr.mxu0 0.0
    %358 = vmatpush1.msra.mxu0 0.0
    %359 = vmatprep.subr.mxu0 0.0
    %360 = vmatpush1.msra.mxu0 0.0
    %361 = vmatprep.subr.mxu0 0.0
    %362 = vmatpush1.msra.mxu0 0.0
    %363 = vmatprep.subr.mxu0 0.0
    %364 = vmatpush1.msra.mxu0 0.0
    %365 = vmatprep.subr.mxu0 0.0
    %366 = vmatpush1.msra.mxu0 0.0
    %367 = vmatprep.subr.mxu0 0.0
    %368 = vmatpush1.msra.mxu0 0.0
    %369 = vmatprep.subr.mxu0 0.0
    %370 = vmatpush1.msra.mxu0 0.0
    %371 = vmatprep.subr.mxu0 0.0
    %372 = vmatpush1.msra.mxu0 0.0
    %373 = vmatprep.subr.mxu0 0.0
    %374 = vmatpush1.msra.mxu0 0.0
    %375 = vmatprep.subr.mxu0 0.0
    %376 = vmatpush1.msra.mxu0 0.0
    %377 = vmatprep.subr.mxu0 0.0
    %378 = vmatpush1.msra.mxu0 0.0
    %379 = vmatprep.subr.mxu0 0.0
    %380 = vmatpush1.msra.mxu0 0.0
    %381 = vmatprep.subr.mxu0 0.0
    %382 = vmatpush1.msra.mxu0 0.0
    %383 = vmatprep.subr.mxu0 0.0
    %384 = vmatpush1.msra.mxu0 0.0
    %385 = vmatprep.subr.mxu0 0.0
    %386 = vmatpush1.msra.mxu0 0.0
    %387 = vmatprep.subr.mxu0 0.0
    %388 = vmatpush1.msra.mxu0 0.0
    %389 = vmatprep.subr.mxu0 0.0
    %390 = vmatpush1.msra.mxu0 0.0
    %391 = vmatprep.subr.mxu0 0.0
    %392 = vmatpush1.msra.mxu0 0.0
    %393 = vmatprep.subr.mxu0 0.0
    %394 = vmatpush1.msra.mxu0 0.0
    %395 = vmatprep.subr.mxu0 0.0
    %396 = vmatpush1.msra.mxu0 0.0
    %397 = vmatprep.mubr.f32.mxu0 0.0
    %398 = vmatmul.mubr.f32.gmra.mrb[0].mxu0 %v331
    %v399 = vpop.f32.mrb[0].mxu0
    %v400 = vadd.f32 %v328, %v399
    %v401 = vpop.f32.mrb[0].mxu0
    %402 = vdwg.mxu0
    %v403 = vmax.f32 %v400, -5.0
    %v404 = vmin.f32 %v403, 2.0
    %v405 = vmul.f32 %v404, 1.442695
    %v406 = vpow.pop %v405
    %v407 = vld [vmem:[%s1] sm:$0xff]
    %409 = vrot.lane.b32.xlu0 %v407, 4
    %v410 = vpop.permute.xlu0 %409
    %v412 = vmul.f32 %v406, %v410
    %414 = vrot.lane.b32.xlu0 %v412, 124
    %v415 = vpop.permute.xlu0 %414
    %v417 = vadd.f32 %v400, %v415
    %v418 = vtanh.pop %v417
    %v419 = vmul.f32 %v407, -0.5
    %v420 = vmul.f32 %v419, %v407
    %422 = vrot.lane.b32.xlu0 %v404, 124
    %v423 = vpop.permute.xlu0 %422
    %v425 = vsub.f32 %v420, %v423
    %v426 = vsub.f32 %v425, 0.9189385
    %vm427 = vcmask 31744
    %v428 = vsel %vm427, %v426, 0.0
    %429 = vadd.xlane.f32.xlu0 %v428
    %v430 = vpop.xlane.xlu0 %429
    %v431 = vmul.f32 %v418, %v418
    %v432 = vsub.f32 1.0, %v431
    %v433 = vadd.f32 %v432, 1e-06
    %v434 = vlog2.pop %v433
    %v435 = vmul.f32 %v434, 0.6931472
    %v436 = vsel %vm427, %v435, 0.0
    %437 = vadd.xlane.f32.xlu0 %v436
    %v438 = vpop.xlane.xlu0 %437
    %v439 = vsub.f32 %v430, %v438
    %440 = vst.msk [vmem:[#allocation8] sm:$0xff] %vm427, %v418
    %442 = vrot.lane.b32.xlu0 %v400, 4
    %v443 = vpop.permute.xlu0 %442
    %vm445 = vcmask 64544
    %446 = vst.msk [vmem:[#allocation8] sm:$0xff] %vm445, %v443
    %448 = vrot.lane.b32.xlu0 %v406, 4
    %v449 = vpop.permute.xlu0 %448
    %vm451 = vcmask 97344
    %452 = vst.msk [vmem:[#allocation8] sm:$0xff] %vm451, %v449
    %vm453 = vcmask 105568
    %454 = vst.msk [vmem:[#allocation8] sm:$0xff] %vm453, %v439
    // Predicated region
    $region46: #{tpu_custom_call.1} parent=1 // pred_check
      _
    $region47: #{tpu_custom_call.1} parent=1 // pred_check_branch
      %456 = sbr.rel (0) target = $region49
    $region48: #{tpu_custom_call.1} parent=1 // pred_region
      %s458 = ssub.s32 128, 128
      %459 = vsyncadd [#allocation4], %s458
      %s461 = sshll.u32 [#allocation8], 4
      %s462 = int_to_ptr.vmem [resolvable:$true] %s461
      %464 = dma.vmem_to_hbm [thread:$0]  %s462, 128, %s8, [#allocation4]
    $region49: #{tpu_custom_call.1} parent=1 // pred_fallthru
      _
    // Predicated region
    $region50: #{tpu_custom_call.1} parent=1 // pred_check
      _
    $region51: #{tpu_custom_call.1} parent=1 // pred_check_branch
      %466 = sbr.rel (0) target = $region53
    $region52: #{tpu_custom_call.1} parent=1 // pred_region
      %467 = dma.done [#allocation4], 128
    $region53: #{tpu_custom_call.1} parent=1 // pred_fallthru
      _
    %468 = vsyncpa [#allocation3], 1
    %469 = vsyncpa [#allocation6], 1
    %470 = vsyncpa [#allocation4], 1

</llo_original>
